<compile_context>
chip_gen: v5e
topology: v5e:2x2
jax: 0.10.0
libtpu: 0.0.40
codegen_flags: <defaults>
</compile_context>

<pallas_src>
import jax
import jax.numpy as jnp
from jax.experimental import pallas as pl
from jax.experimental.pallas import tpu as pltpu


def _round_up(a, b):
    return (a + b - 1) // b * b


def _ffn_kernel(x_ref, w1_ref, b1_ref, w2_ref, b2_ref, o_ref):
    # x_ref : (tr, Dp) f32       w1_ref: (Dp, Hp) mxu_dtype   b1_ref: (1, Hp) f32
    # w2_ref: (Hp, Dp) mxu_dtype b2_ref: (1, Dp) f32          o_ref : (tr, Dp)
    x = x_ref[...]
    # Downcast only the MXU operands; bias add / ReLU stay in f32 (cheap on the VPU).
    h = jnp.dot(x.astype(w1_ref.dtype), w1_ref[...],
                preferred_element_type=jnp.float32)
    h = jnp.maximum(h + b1_ref[...], 0.0)                        # ReLU (f32)
    # (dropout == identity in eval mode)
    y = jnp.dot(h.astype(w2_ref.dtype), w2_ref[...],
                preferred_element_type=jnp.float32)
    o_ref[...] = (y + b2_ref[...]).astype(o_ref.dtype)


def positionwise_feed_forward(x, w1, b1, w2, b2, *,
                              block_rows=2048,
                              mxu_dtype=jnp.bfloat16,
                              dropout_rate=0.1,
                              is_training=False):
    """
    x : [B, L, D]  float32
    w1: [D, H], b1: [H]   (already transposed vs. torch nn.Linear.weight)
    w2: [H, D], b2: [D]
    returns [B, L, D]
    """
    if is_training and dropout_rate > 0.0:
        raise NotImplementedError(
            "training-mode dropout not implemented (eval-mode identity only)")

    B, L, D = x.shape
    H = w1.shape[1]
    M = B * L

    # Pack P logical rows of width D into one 128-lane row (free reshape) so both
    # matmul lane dims are >= 128 and all HBM loads/stores are lane-dense.
    P = 128 // D if (D < 128 and 128 % D == 0) else 1
    Dp, Hp = P * D, P * H

    eye = jnp.eye(P, dtype=w1.dtype)
    w1p = jnp.kron(eye, w1).astype(mxu_dtype)                    # (Dp, Hp) block-diag
    w2p = jnp.kron(eye, w2).astype(mxu_dtype)                    # (Hp, Dp) block-diag
    b1p = jnp.tile(b1.astype(jnp.float32), P).reshape(1, Hp)
    b2p = jnp.tile(b2.astype(jnp.float32), P).reshape(1, Dp)

    # ---- Packed-row tiling -------------------------------------------------
    Mr = pl.cdiv(M, P)                                           # packed rows needed

    # VMEM-footprint-aware cap on the tile height:
    #   x (f32, double-buffered) + out (f32, double-buffered) + bf16 copy of x
    #   + h (f32) + bf16 copy of h, per packed row.
    bytes_per_row = 18 * Dp + 6 * Hp
    vmem_budget = 12 << 20                                       # stay under scoped default
    tr_cap = max(8, (vmem_budget // bytes_per_row) // 8 * 8)

    block_rows = _round_up(max(8, block_rows), 8)
    tr = max(8, min(block_rows, tr_cap, _round_up(Mr, 8)))
    if Mr > 8 and _round_up(Mr, tr) // tr < 2:
        # keep at least 2 parallel grid steps so v7x's 2 TensorCores both run
        tr = max(8, _round_up(pl.cdiv(Mr, 2), 8))
    Mr_pad = _round_up(Mr, tr)
    grid = Mr_pad // tr

    x_flat = x.reshape(M * D)
    pad = Mr_pad * Dp - M * D
    if pad:
        x_flat = jnp.pad(x_flat, (0, pad))                       # ragged tail only
    x2 = x_flat.reshape(Mr_pad, Dp)

    flops = 4 * M * D * H
    bytes_accessed = int(
        Mr_pad * Dp * x.dtype.itemsize                           # x read
        + Mr_pad * Dp * x.dtype.itemsize                         # out write
        + (w1p.size + w2p.size) * w1p.dtype.itemsize             # resident weights
        + (b1p.size + b2p.size) * 4)                             # biases

    out = pl.pallas_call(
        _ffn_kernel,
        out_shape=jax.ShapeDtypeStruct((Mr_pad, Dp), x.dtype),
        grid=(grid,),
        in_specs=[
            pl.BlockSpec((tr, Dp), lambda i: (i, 0)),            # packed row tile of x
            pl.BlockSpec((Dp, Hp), lambda i: (0, 0)),            # resident W1
            pl.BlockSpec((1, Hp), lambda i: (0, 0)),             # resident b1
            pl.BlockSpec((Hp, Dp), lambda i: (0, 0)),            # resident W2
            pl.BlockSpec((1, Dp), lambda i: (0, 0)),             # resident b2
        ],
        out_specs=pl.BlockSpec((tr, Dp), lambda i: (i, 0)),      # lane-dense output
        compiler_params=pltpu.CompilerParams(
            dimension_semantics=("parallel",)),
        cost_estimate=pl.CostEstimate(
            flops=flops, transcendentals=0, bytes_accessed=bytes_accessed),
    )(x2, w1p, b1p, w2p, b2p)

    # Packed rows flatten back to the original row-major order; drop the pad.
    return out.reshape(Mr_pad * Dp)[: M * D].reshape(B, L, D)


def _reference(x, w1, b1, w2, b2):
    h = jnp.maximum(jnp.einsum("bld,dh->blh", x, w1) + b1, 0.0)
    return jnp.einsum("blh,hd->bld", h, w2) + b2


if __name__ == "__main__":
    # Small shapes consistent with the module's forward:
    # batch=2, ranking_size=8, num_features=32, hid_dim=64
    B, L, D, H = 2, 8, 32, 64

    key = jax.random.PRNGKey(0)
    kx, kw1, kb1, kw2, kb2, kx2 = jax.random.split(key, 6)

    x = jax.random.normal(kx, (B, L, D), dtype=jnp.float32)
    # deterministic params (nn.Linear shapes: w1 (H,D), w2 (D,H)); stored transposed
    w1 = jax.random.normal(kw1, (D, H), dtype=jnp.float32) * (1.0 / D ** 0.5)
    b1 = jax.random.normal(kb1, (H,), dtype=jnp.float32) * 0.01
    w2 = jax.random.normal(kw2, (H, D), dtype=jnp.float32) * (1.0 / H ** 0.5)
    b2 = jax.random.normal(kb2, (D,), dtype=jnp.float32) * 0.01

    y_ref = _reference(x, w1, b1, w2, b2)

    # Default (bf16 MXU operands, f32 elementwise/accumulate).
    y_bf16 = positionwise_feed_forward(x, w1, b1, w2, b2)
    jax.block_until_ready(y_bf16)
    assert y_bf16.shape == (B, L, D)
    assert jnp.allclose(y_bf16, y_ref, atol=5e-2, rtol=5e-2)

    # Full-f32 MXU path matches the reference tightly.
    y_f32 = positionwise_feed_forward(x, w1, b1, w2, b2, mxu_dtype=jnp.float32)
    jax.block_until_ready(y_f32)
    assert jnp.allclose(y_f32, y_ref, atol=1e-4, rtol=1e-4)

    # Ragged row count (exercises wrapper-side zero-padding of the last tile).
    x3 = jax.random.normal(kx2, (2, 7, D), dtype=jnp.float32)
    y3 = positionwise_feed_forward(x3, w1, b1, w2, b2)
    jax.block_until_ready(y3)
    assert y3.shape == (2, 7, D)
    assert jnp.allclose(y3, _reference(x3, w1, b1, w2, b2), atol=5e-2, rtol=5e-2)

    # Larger row count (exercises multi-step grid + parallel tiling path).
    x4 = jax.random.normal(kx2, (8, 512, D), dtype=jnp.float32)
    y4 = positionwise_feed_forward(x4, w1, b1, w2, b2)
    jax.block_until_ready(y4)
    assert y4.shape == (8, 512, D)
    assert jnp.allclose(y4, _reference(x4, w1, b1, w2, b2), atol=5e-2, rtol=5e-2)

    print("KERNEL_OK")
</pallas_src>

<mosaic_0001>
module attributes {stable_mosaic.version = 11 : i64} {
  func.func @_ffn_kernel(%arg0: i32, %arg1: memref<8x128xf32, #tpu.memory_space<vmem>>, %arg2: memref<128x256xbf16, #tpu.memory_space<vmem>>, %arg3: memref<1x256xf32, #tpu.memory_space<vmem>>, %arg4: memref<256x128xbf16, #tpu.memory_space<vmem>>, %arg5: memref<1x128xf32, #tpu.memory_space<vmem>>, %arg6: memref<8x128xf32, #tpu.memory_space<vmem>>) attributes {dimension_semantics = [#tpu.dimension_semantics<parallel>], iteration_bounds = array<i64: 1>, scalar_prefetch = 0 : i64, scratch_operands = 0 : i64, tpu.core_type = #tpu.core_type<tc>, window_params = [{transform_indices = @transform_0, window_bounds = array<i64: 8, 128>}, {pipeline_mode = #tpu.pipeline_mode<synchronous>, transform_indices = @transform_1, window_bounds = array<i64: 128, 256>}, {pipeline_mode = #tpu.pipeline_mode<synchronous>, transform_indices = @transform_2, window_bounds = array<i64: 1, 256>}, {pipeline_mode = #tpu.pipeline_mode<synchronous>, transform_indices = @transform_3, window_bounds = array<i64: 256, 128>}, {pipeline_mode = #tpu.pipeline_mode<synchronous>, transform_indices = @transform_4, window_bounds = array<i64: 1, 128>}, {transform_indices = @transform_5, window_bounds = array<i64: 8, 128>}]} {
    %c0 = arith.constant 0 : index
    %c0_0 = arith.constant 0 : index
    %0 = vector.load %arg1[%c0, %c0_0] : memref<8x128xf32, #tpu.memory_space<vmem>>, vector<8x128xf32>
    %1 = arith.truncf %0 : vector<8x128xf32> to vector<8x128xbf16>
    %c0_1 = arith.constant 0 : index
    %c0_2 = arith.constant 0 : index
    %2 = vector.load %arg2[%c0_1, %c0_2] : memref<128x256xbf16, #tpu.memory_space<vmem>>, vector<128x256xbf16>
    %cst = arith.constant dense<0.000000e+00> : vector<8x256xf32>
    %3 = tpu.matmul %1, %2, %cst {dimension_numbers = #tpu.dot_dimension_numbers<[1], [0], [0], [1], [0, 0, 1, 1], [], []>} : vector<8x128xbf16>, vector<128x256xbf16>, vector<8x256xf32> -> vector<8x256xf32>
    %c0_3 = arith.constant 0 : index
    %c0_4 = arith.constant 0 : index
    %4 = vector.load %arg3[%c0_3, %c0_4] : memref<1x256xf32, #tpu.memory_space<vmem>>, vector<1x256xf32>
    %5 = vector.broadcast %4 : vector<1x256xf32> to vector<8x256xf32>
    %6 = arith.addf %3, %5 : vector<8x256xf32>
    %cst_5 = arith.constant 0.000000e+00 : f32
    %7 = vector.broadcast %cst_5 : f32 to vector<8x256xf32>
    %8 = arith.maximumf %6, %7 : vector<8x256xf32>
    %9 = arith.truncf %8 : vector<8x256xf32> to vector<8x256xbf16>
    %c0_6 = arith.constant 0 : index
    %c0_7 = arith.constant 0 : index
    %10 = vector.load %arg4[%c0_6, %c0_7] : memref<256x128xbf16, #tpu.memory_space<vmem>>, vector<256x128xbf16>
    %cst_8 = arith.constant dense<0.000000e+00> : vector<8x128xf32>
    %11 = tpu.matmul %9, %10, %cst_8 {dimension_numbers = #tpu.dot_dimension_numbers<[1], [0], [0], [1], [0, 0, 1, 1], [], []>} : vector<8x256xbf16>, vector<256x128xbf16>, vector<8x128xf32> -> vector<8x128xf32>
    %c0_9 = arith.constant 0 : index
    %c0_10 = arith.constant 0 : index
    %12 = vector.load %arg5[%c0_9, %c0_10] : memref<1x128xf32, #tpu.memory_space<vmem>>, vector<1x128xf32>
    %13 = vector.broadcast %12 : vector<1x128xf32> to vector<8x128xf32>
    %14 = arith.addf %11, %13 : vector<8x128xf32>
    %c0_11 = arith.constant 0 : index
    %c0_12 = arith.constant 0 : index
    %15 = vector.load %arg6[%c0_11, %c0_12] : memref<8x128xf32, #tpu.memory_space<vmem>>, vector<8x128xf32>
    tpu.vector_store %arg6[%c0_11, %c0_12], %14 {strides = array<i32>} : memref<8x128xf32, #tpu.memory_space<vmem>>, vector<8x128xf32>,
    return
  }
  func.func @transform_0(%arg0: i32) -> (i32, i32) {
    %c0_i32 = arith.constant 0 : i32
    %c0_i32_0 = arith.constant 0 : i32
    return %arg0, %c0_i32 : i32, i32
  }
  func.func @transform_1(%arg0: i32) -> (i32, i32) {
    %c0_i32 = arith.constant 0 : i32
    %c0_i32_0 = arith.constant 0 : i32
    %c0_i32_1 = arith.constant 0 : i32
    return %c0_i32, %c0_i32_0 : i32, i32
  }
  func.func @transform_2(%arg0: i32) -> (i32, i32) {
    %c0_i32 = arith.constant 0 : i32
    %c0_i32_0 = arith.constant 0 : i32
    %c0_i32_1 = arith.constant 0 : i32
    return %c0_i32, %c0_i32_0 : i32, i32
  }
  func.func @transform_3(%arg0: i32) -> (i32, i32) {
    %c0_i32 = arith.constant 0 : i32
    %c0_i32_0 = arith.constant 0 : i32
    %c0_i32_1 = arith.constant 0 : i32
    return %c0_i32, %c0_i32_0 : i32, i32
  }
  func.func @transform_4(%arg0: i32) -> (i32, i32) {
    %c0_i32 = arith.constant 0 : i32
    %c0_i32_0 = arith.constant 0 : i32
    %c0_i32_1 = arith.constant 0 : i32
    return %c0_i32, %c0_i32_0 : i32, i32
  }
  func.func @transform_5(%arg0: i32) -> (i32, i32) {
    %c0_i32 = arith.constant 0 : i32
    %c0_i32_0 = arith.constant 0 : i32
    return %arg0, %c0_i32 : i32, i32
  }
}

</mosaic_0001>

<llo_original>
// kernel: tpu_custom_call.1
$region0: #{tpu_custom_call.1}
  #allocation0 [shape = 'u32[]', space=smem, size = 0x4, offset = 0x4, fixed_abs, tag = 'smem constant byte address 0x4 - core index']
  #allocation1 [shape = 'u32[72,128]{1,0:T(1,128)}', space=vmem, size = 0x9000, scoped, tag = 'internal scratch']
  %s0 = inlined_call_operand.hbm [shape: f32[8,128], index: 0, kind: input, shape index: {}]
  %s1 = inlined_call_operand.hbm [shape: bf16[128,256], index: 1, kind: input, shape index: {}]
  %s2 = inlined_call_operand.hbm [shape: f32[1,256], index: 2, kind: input, shape index: {}]
  %s3 = inlined_call_operand.hbm [shape: bf16[256,128], index: 3, kind: input, shape index: {}]
  %s4 = inlined_call_operand.vmem [shape: f32[1,128], index: 4, kind: input, shape index: {}]
  %s5 = inlined_call_operand.hbm [shape: f32[8,128], index: 5, kind: output, shape index: {}]
  %s6 = sld [smem:[#allocation0]]
  $region46: #{tpu_custom_call.1} parent=0
    _
  %s8 = ssub.s32 1, %s6
  %s9 = scalar_select 0, %s8, %s6
  $region1: #{tpu_custom_call.1} parent=0
    #allocation2 [shape = 'u8[4096]{0}', space=vmem, size = 0x1000, scoped, tag = 'input window, operand 0, single buffered']
    #allocation3 [shape = 's32[1]{0}', space=sflag, size = 0x4, scoped, tag = 'scoped memory for tpu_custom_call.1']
    #allocation4 [shape = 's32[1]{0}', space=sflag, size = 0x4, scoped, tag = 'scoped memory for tpu_custom_call.1']
    #allocation5 [shape = 'u8[65536]{0}', space=vmem, size = 0x10000, scoped, tag = 'input window, operand 1, single buffered']
    #allocation6 [shape = 's32[1]{0}', space=sflag, size = 0x4, scoped, tag = 'scoped memory for tpu_custom_call.1']
    #allocation7 [shape = 'u8[1024]{0}', space=vmem, size = 0x400, scoped, tag = 'input window, operand 2, single buffered']
    #allocation8 [shape = 'u8[65536]{0}', space=vmem, size = 0x10000, scoped, tag = 'input window, operand 3, single buffered']
    #allocation9 [shape = 's32[1]{0}', space=sflag, size = 0x4, scoped, tag = 'scoped memory for tpu_custom_call.1']
    #allocation10 [shape = 'u8[4096]{0}', space=vmem, size = 0x1000, scoped, tag = 'output window, operand 0, single buffered']
    %10 = vsyncpa [#allocation3], 0
    %11 = vsyncpa [#allocation6], 0
    %12 = vsyncpa [#allocation9], 0
    %13 = vsyncpa [#allocation4], 0
    // Predicated region
    $region2: #{tpu_custom_call.1} parent=1 // pred_check
      _
    $region3: #{tpu_custom_call.1} parent=1 // pred_check_branch
      %15 = sbr.rel (0) target = $region5
    $region4: #{tpu_custom_call.1} parent=1 // pred_region
      %17 = vsyncadd [#allocation3], 0
      %s19 = sshll.u32 %s0, 4
      %s20 = int_to_ptr.hbm [resolvable:$true] %s19
      %s21 = sshll.u32 [#allocation2], 4
      %s22 = int_to_ptr.vmem [resolvable:$true] %s21
      %24 = dma.hbm_to_vmem [thread:$0]  %s20, 128, %s22, [#allocation3]
    $region5: #{tpu_custom_call.1} parent=1 // pred_fallthru
      _
    // Predicated region
    $region6: #{tpu_custom_call.1} parent=1 // pred_check
      _
    $region7: #{tpu_custom_call.1} parent=1 // pred_check_branch
      %26 = sbr.rel (0) target = $region9
    $region8: #{tpu_custom_call.1} parent=1 // pred_region
      %28 = vsyncadd [#allocation6], 0
      %s29 = sshll.u32 %s1, 4
      %s30 = int_to_ptr.hbm [resolvable:$true] %s29
      %s31 = sshll.u32 [#allocation5], 4
      %s32 = int_to_ptr.vmem [resolvable:$true] %s31
      %37 = dma.hbm_to_vmem [thread:$0]  %s30, 2048, %s32, [#allocation6], 128, 128, 8
    $region9: #{tpu_custom_call.1} parent=1 // pred_fallthru
      _
    // Predicated region
    $region10: #{tpu_custom_call.1} parent=1 // pred_check
      _
    $region11: #{tpu_custom_call.1} parent=1 // pred_check_branch
      %39 = sbr.rel (0) target = $region13
    $region12: #{tpu_custom_call.1} parent=1 // pred_region
      %41 = vsyncadd [#allocation6], 0
      %s43 = sshll.u32 %s2, 4
      %s44 = int_to_ptr.hbm [resolvable:$true] %s43
      %s45 = sshll.u32 [#allocation7], 4
      %s46 = int_to_ptr.vmem [resolvable:$true] %s45
      %48 = dma.hbm_to_vmem [thread:$0]  %s44, 32, %s46, [#allocation6]
    $region13: #{tpu_custom_call.1} parent=1 // pred_fallthru
      _
    // Predicated region
    $region14: #{tpu_custom_call.1} parent=1 // pred_check
      _
    $region15: #{tpu_custom_call.1} parent=1 // pred_check_branch
      %50 = sbr.rel (0) target = $region17
    $region16: #{tpu_custom_call.1} parent=1 // pred_region
      %52 = vsyncadd [#allocation9], 0
      %s53 = sshll.u32 %s3, 4
      %s54 = int_to_ptr.hbm [resolvable:$true] %s53
      %s55 = sshll.u32 [#allocation8], 4
      %s56 = int_to_ptr.vmem [resolvable:$true] %s55
      %61 = dma.hbm_to_vmem [thread:$0]  %s54, 2048, %s56, [#allocation9], 64, 64, 4
    $region17: #{tpu_custom_call.1} parent=1 // pred_fallthru
      _
    // Predicated region
    $region18: #{tpu_custom_call.1} parent=1 // pred_check
      _
    $region19: #{tpu_custom_call.1} parent=1 // pred_check_branch
      %63 = sbr.rel (0) target = $region21
    $region20: #{tpu_custom_call.1} parent=1 // pred_region
      _
    $region21: #{tpu_custom_call.1} parent=1 // pred_fallthru
      _
    // Predicated region
    $region22: #{tpu_custom_call.1} parent=1 // pred_check
      _
    $region23: #{tpu_custom_call.1} parent=1 // pred_check_branch
      %65 = sbr.rel (0) target = $region25
    $region24: #{tpu_custom_call.1} parent=1 // pred_region
      %67 = dma.done [#allocation3], 128
    $region25: #{tpu_custom_call.1} parent=1 // pred_fallthru
      _
    // Predicated region
    $region26: #{tpu_custom_call.1} parent=1 // pred_check
      _
    $region27: #{tpu_custom_call.1} parent=1 // pred_check_branch
      %69 = sbr.rel (0) target = $region29
    $region28: #{tpu_custom_call.1} parent=1 // pred_region
      %71 = dma.done [#allocation6], 2048
    $region29: #{tpu_custom_call.1} parent=1 // pred_fallthru
      _
    // Predicated region
    $region30: #{tpu_custom_call.1} parent=1 // pred_check
      _
    $region31: #{tpu_custom_call.1} parent=1 // pred_check_branch
      %73 = sbr.rel (0) target = $region33
    $region32: #{tpu_custom_call.1} parent=1 // pred_region
      %75 = dma.done [#allocation6], 32
    $region33: #{tpu_custom_call.1} parent=1 // pred_fallthru
      _
    // Predicated region
    $region34: #{tpu_custom_call.1} parent=1 // pred_check
      _
    $region35: #{tpu_custom_call.1} parent=1 // pred_check_branch
      %77 = sbr.rel (0) target = $region37
    $region36: #{tpu_custom_call.1} parent=1 // pred_region
      %79 = dma.done [#allocation9], 2048
    $region37: #{tpu_custom_call.1} parent=1 // pred_fallthru
      _
    %v80 = vld [vmem:[#allocation2] sm:$0xff]
    %v81 = vpack.c.bf16 %v80, %v80
    %v82 = vld [vmem:[#allocation5] sm:$0xff]
    %v83 = vld [vmem:[#allocation5 + $0x8] sm:$0xff]
    %v84 = vld [vmem:[#allocation5 + $0x10] sm:$0xff]
    %v85 = vld [vmem:[#allocation5 + $0x18] sm:$0xff]
    %v86 = vld [vmem:[#allocation5 + $0x20] sm:$0xff]
    %v87 = vld [vmem:[#allocation5 + $0x28] sm:$0xff]
    %v88 = vld [vmem:[#allocation5 + $0x30] sm:$0xff]
    %v89 = vld [vmem:[#allocation5 + $0x38] sm:$0xff]
    %v90 = vld [vmem:[#allocation5 + $0x40] sm:$0xff]
    %v91 = vld [vmem:[#allocation5 + $0x48] sm:$0xff]
    %v92 = vld [vmem:[#allocation5 + $0x50] sm:$0xff]
    %v93 = vld [vmem:[#allocation5 + $0x58] sm:$0xff]
    %v94 = vld [vmem:[#allocation5 + $0x60] sm:$0xff]
    %v95 = vld [vmem:[#allocation5 + $0x68] sm:$0xff]
    %v96 = vld [vmem:[#allocation5 + $0x70] sm:$0xff]
    %v97 = vld [vmem:[#allocation5 + $0x78] sm:$0xff]
    %v98 = vld [vmem:[#allocation7] sm:$0x3]
    %v100 = vperm.slane %v98, 0
    %v101 = vperm.slane %v98, 1
    %v120 = vunpack.c.l.b16 %v82
    %v121 = vunpack.c.h.b16 %v82
    %v122 = vunpack.c.l.b16 %v83
    %v123 = vunpack.c.h.b16 %v83
    %v124 = vunpack.c.l.b16 %v84
    %v125 = vunpack.c.h.b16 %v84
    %v126 = vunpack.c.l.b16 %v85
    %v127 = vunpack.c.h.b16 %v85
    %v128 = vunpack.c.l.b16 %v86
    %v129 = vunpack.c.h.b16 %v86
    %v130 = vunpack.c.l.b16 %v87
    %v131 = vunpack.c.h.b16 %v87
    %v132 = vunpack.c.l.b16 %v88
    %v133 = vunpack.c.h.b16 %v88
    %v134 = vunpack.c.l.b16 %v89
    %v135 = vunpack.c.h.b16 %v89
    %v136 = vunpack.c.l.b16 %v90
    %v137 = vunpack.c.h.b16 %v90
    %v138 = vunpack.c.l.b16 %v91
    %v139 = vunpack.c.h.b16 %v91
    %v140 = vunpack.c.l.b16 %v92
    %v141 = vunpack.c.h.b16 %v92
    %v142 = vunpack.c.l.b16 %v93
    %v143 = vunpack.c.h.b16 %v93
    %v144 = vunpack.c.l.b16 %v94
    %v145 = vunpack.c.h.b16 %v94
    %v146 = vunpack.c.l.b16 %v95
    %v147 = vunpack.c.h.b16 %v95
    %v148 = vunpack.c.l.b16 %v96
    %v149 = vunpack.c.h.b16 %v96
    %v150 = vunpack.c.l.b16 %v97
    %v151 = vunpack.c.h.b16 %v97
    %v152 = vpack.c.b16 %v122, %v120
    %v153 = vpack.c.b16 %v123, %v121
    %v154 = vpack.c.b16 %v126, %v124
    %v155 = vpack.c.b16 %v127, %v125
    %v156 = vpack.c.b16 %v130, %v128
    %v157 = vpack.c.b16 %v131, %v129
    %v158 = vpack.c.b16 %v134, %v132
    %v159 = vpack.c.b16 %v135, %v133
    %v160 = vpack.c.b16 %v138, %v136
    %v161 = vpack.c.b16 %v139, %v137
    %v162 = vpack.c.b16 %v142, %v140
    %v163 = vpack.c.b16 %v143, %v141
    %v164 = vpack.c.b16 %v146, %v144
    %v165 = vpack.c.b16 %v147, %v145
    %v166 = vpack.c.b16 %v150, %v148
    %v167 = vpack.c.b16 %v151, %v149
    %184 = vmatpush.bf16.msra.mxu0 %v166
    %185 = vmatpush.bf16.msra.mxu0 %v164
    %186 = vmatpush.bf16.msra.mxu0 %v162
    %187 = vmatpush.bf16.msra.mxu0 %v160
    %188 = vmatpush.bf16.msra.mxu0 %v158
    %189 = vmatpush.bf16.msra.mxu0 %v156
    %190 = vmatpush.bf16.msra.mxu0 %v154
    %191 = vmatpush.bf16.msra.mxu0 %v152
    %192 = vmatmul.bf16.gmra.mxu0 %v81
    %v193 = vpop.f32.mrf.mxu0
    %v194 = vadd.f32 %v100, %v193
    %v195 = vpop.f32.mrf.mxu0
    %196 = vdwg.mxu0
    %197 = vmatpush.bf16.msra.mxu0 %v167
    %198 = vmatpush.bf16.msra.mxu0 %v165
    %199 = vmatpush.bf16.msra.mxu0 %v163
    %200 = vmatpush.bf16.msra.mxu0 %v161
    %201 = vmatpush.bf16.msra.mxu0 %v159
    %202 = vmatpush.bf16.msra.mxu0 %v157
    %203 = vmatpush.bf16.msra.mxu0 %v155
    %204 = vmatpush.bf16.msra.mxu0 %v153
    %205 = vmatmul.bf16.gmra.mxu0 %v81
    %v206 = vpop.f32.mrf.mxu0
    %v207 = vadd.f32 %v101, %v206
    %v208 = vpop.f32.mrf.mxu0
    %209 = vdwg.mxu0
    %v210 = vmax.f32 %v194, 0.0
    %v211 = vmax.f32 %v207, 0.0
    %v212 = vpack.c.bf16 %v210, %v210
    %v213 = vpack.c.bf16 %v211, %v211
    %v214 = vld [vmem:[#allocation8] sm:$0xf]
    %v215 = vld [vmem:[#allocation8 + $0x4] sm:$0xf]
    %v216 = vld [vmem:[#allocation8 + $0x8] sm:$0xf]
    %v217 = vld [vmem:[#allocation8 + $0xc] sm:$0xf]
    %v218 = vld [vmem:[#allocation8 + $0x10] sm:$0xf]
    %v219 = vld [vmem:[#allocation8 + $0x14] sm:$0xf]
    %v220 = vld [vmem:[#allocation8 + $0x18] sm:$0xf]
    %v221 = vld [vmem:[#allocation8 + $0x1c] sm:$0xf]
    %v222 = vld [vmem:[#allocation8 + $0x20] sm:$0xf]
    %v223 = vld [vmem:[#allocation8 + $0x24] sm:$0xf]
    %v224 = vld [vmem:[#allocation8 + $0x28] sm:$0xf]
    %v225 = vld [vmem:[#allocation8 + $0x2c] sm:$0xf]
    %v226 = vld [vmem:[#allocation8 + $0x30] sm:$0xf]
    %v227 = vld [vmem:[#allocation8 + $0x34] sm:$0xf]
    %v228 = vld [vmem:[#allocation8 + $0x38] sm:$0xf]
    %v229 = vld [vmem:[#allocation8 + $0x3c] sm:$0xf]
    %v230 = vld [vmem:[#allocation8 + $0x40] sm:$0xf]
    %v231 = vld [vmem:[#allocation8 + $0x44] sm:$0xf]
    %v232 = vld [vmem:[#allocation8 + $0x48] sm:$0xf]
    %v233 = vld [vmem:[#allocation8 + $0x4c] sm:$0xf]
    %v234 = vld [vmem:[#allocation8 + $0x50] sm:$0xf]
    %v235 = vld [vmem:[#allocation8 + $0x54] sm:$0xf]
    %v236 = vld [vmem:[#allocation8 + $0x58] sm:$0xf]
    %v237 = vld [vmem:[#allocation8 + $0x5c] sm:$0xf]
    %v238 = vld [vmem:[#allocation8 + $0x60] sm:$0xf]
    %v239 = vld [vmem:[#allocation8 + $0x64] sm:$0xf]
    %v240 = vld [vmem:[#allocation8 + $0x68] sm:$0xf]
    %v241 = vld [vmem:[#allocation8 + $0x6c] sm:$0xf]
    %v242 = vld [vmem:[#allocation8 + $0x70] sm:$0xf]
    %v243 = vld [vmem:[#allocation8 + $0x74] sm:$0xf]
    %v244 = vld [vmem:[#allocation8 + $0x78] sm:$0xf]
    %v245 = vld [vmem:[#allocation8 + $0x7c] sm:$0xf]
    %v246 = vld [vmem:[%s4] sm:$0x1]
    %v248 = vperm.slane %v246, 0
    %v282 = vunpack.c.l.b16 %v214
    %v283 = vunpack.c.l.b16 %v215
    %v284 = vunpack.c.l.b16 %v216
    %v285 = vunpack.c.l.b16 %v217
    %v286 = vunpack.c.l.b16 %v218
    %v287 = vunpack.c.l.b16 %v219
    %v288 = vunpack.c.l.b16 %v220
    %v289 = vunpack.c.l.b16 %v221
    %v290 = vunpack.c.l.b16 %v222
    %v291 = vunpack.c.l.b16 %v223
    %v292 = vunpack.c.l.b16 %v224
    %v293 = vunpack.c.l.b16 %v225
    %v294 = vunpack.c.l.b16 %v226
    %v295 = vunpack.c.l.b16 %v227
    %v296 = vunpack.c.l.b16 %v228
    %v297 = vunpack.c.l.b16 %v229
    %v298 = vunpack.c.l.b16 %v230
    %v299 = vunpack.c.l.b16 %v231
    %v300 = vunpack.c.l.b16 %v232
    %v301 = vunpack.c.l.b16 %v233
    %v302 = vunpack.c.l.b16 %v234
    %v303 = vunpack.c.l.b16 %v235
    %v304 = vunpack.c.l.b16 %v236
    %v305 = vunpack.c.l.b16 %v237
    %v306 = vunpack.c.l.b16 %v238
    %v307 = vunpack.c.l.b16 %v239
    %v308 = vunpack.c.l.b16 %v240
    %v309 = vunpack.c.l.b16 %v241
    %v310 = vunpack.c.l.b16 %v242
    %v311 = vunpack.c.l.b16 %v243
    %v312 = vunpack.c.l.b16 %v244
    %v313 = vunpack.c.l.b16 %v245
    %v314 = vpack.c.b16 %v283, %v282
    %v315 = vpack.c.b16 %v285, %v284
    %v316 = vpack.c.b16 %v287, %v286
    %v317 = vpack.c.b16 %v289, %v288
    %v318 = vpack.c.b16 %v291, %v290
    %v319 = vpack.c.b16 %v293, %v292
    %v320 = vpack.c.b16 %v295, %v294
    %v321 = vpack.c.b16 %v297, %v296
    %v322 = vpack.c.b16 %v299, %v298
    %v323 = vpack.c.b16 %v301, %v300
    %v324 = vpack.c.b16 %v303, %v302
    %v325 = vpack.c.b16 %v305, %v304
    %v326 = vpack.c.b16 %v307, %v306
    %v327 = vpack.c.b16 %v309, %v308
    %v328 = vpack.c.b16 %v311, %v310
    %v329 = vpack.c.b16 %v313, %v312
    %346 = vmatpush.bf16.msra.mxu0 %v321
    %347 = vmatpush.bf16.msra.mxu0 %v320
    %348 = vmatpush.bf16.msra.mxu0 %v319
    %349 = vmatpush.bf16.msra.mxu0 %v318
    %350 = vmatpush.bf16.msra.mxu0 %v317
    %351 = vmatpush.bf16.msra.mxu0 %v316
    %352 = vmatpush.bf16.msra.mxu0 %v315
    %353 = vmatpush.bf16.msra.mxu0 %v314
    %354 = vmatmul.bf16.gmra.mxu0 %v212
    %v355 = vpop.f32.mrf.mxu0
    %v356 = vadd.f32 %v248, %v355
    %v357 = vpop.f32.mrf.mxu0
    %358 = vdwg.mxu0
    %359 = vmatpush.bf16.msra.mxu0 %v329
    %360 = vmatpush.bf16.msra.mxu0 %v328
    %361 = vmatpush.bf16.msra.mxu0 %v327
    %362 = vmatpush.bf16.msra.mxu0 %v326
    %363 = vmatpush.bf16.msra.mxu0 %v325
    %364 = vmatpush.bf16.msra.mxu0 %v324
    %365 = vmatpush.bf16.msra.mxu0 %v323
    %366 = vmatpush.bf16.msra.mxu0 %v322
    %367 = vmatmul.bf16.gmra.mxu0 %v213
    %v368 = vpop.f32.mrf.mxu0
    %v369 = vadd.f32 %v356, %v368
    %v370 = vpop.f32.mrf.mxu0
    %371 = vdwg.mxu0
    %372 = vst [vmem:[#allocation10] sm:$0xff] %v369
    // Predicated region
    $region38: #{tpu_custom_call.1} parent=1 // pred_check
      _
    $region39: #{tpu_custom_call.1} parent=1 // pred_check_branch
      %374 = sbr.rel (0) target = $region41
    $region40: #{tpu_custom_call.1} parent=1 // pred_region
      %376 = vsyncadd [#allocation4], 0
      %s378 = sshll.u32 [#allocation10], 4
      %s379 = int_to_ptr.vmem [resolvable:$true] %s378
      %s380 = sshll.u32 %s5, 4
      %s381 = int_to_ptr.hbm [resolvable:$true] %s380
      %383 = dma.vmem_to_hbm [thread:$0]  %s379, 128, %s381, [#allocation4]
    $region41: #{tpu_custom_call.1} parent=1 // pred_fallthru
      _
    // Predicated region
    $region42: #{tpu_custom_call.1} parent=1 // pred_check
      _
    $region43: #{tpu_custom_call.1} parent=1 // pred_check_branch
      %385 = sbr.rel (0) target = $region45
    $region44: #{tpu_custom_call.1} parent=1 // pred_region
      %387 = dma.done [#allocation4], 128
    $region45: #{tpu_custom_call.1} parent=1 // pred_fallthru
      _
    %388 = vsyncpa [#allocation3], 1
    %389 = vsyncpa [#allocation6], 1
    %390 = vsyncpa [#allocation9], 1
    %391 = vsyncpa [#allocation4], 1

</llo_original>
